<compile_context>
chip_gen: v6e
topology: v6e:2x2x1
jax: 0.10.0
libtpu: 0.0.40
codegen_flags: <defaults>
</compile_context>

<pallas_src>
import jax
import jax.numpy as jnp
from jax.experimental import pallas as pl
from jax.experimental.pallas import tpu as pltpu


def _logreg_kernel(x_ref, w_ref, b_ref, o_ref):
    # x_ref: [F, TILE_B]  (features on sublanes, batch on lanes)
    # w_ref: [F, 1]       (broadcast across lanes)
    # b_ref: [1]          (SMEM scalar)
    # o_ref: [1, TILE_B]  (lane-dense output row)
    x = x_ref[...]                                   # [F, TB]  f32
    w = w_ref[...]                                   # [F, 1]   f32
    # VPU multiply + XLU sublane-reduce; stays off the MXU entirely.
    z = jnp.sum(x * w, axis=0, keepdims=True) + b_ref[0]   # [1, TB]
    o_ref[...] = jax.nn.sigmoid(z).astype(o_ref.dtype)     # EUP sigmoid in f32


def _pick_tile_b(B):
    """Lane-dense batch tile: multiple of 128 when possible, else full B."""
    if B % 128 == 0:
        for t in (2048, 1024, 512, 256, 128):
            if B % t == 0:
                return t
    return B  # small / ragged batch: single full-array block


def logistic_regression(x, w, b):
    """x: [B, F] f32, w: [F, 1] f32, b: [1] f32 -> [B, 1] f32 = sigmoid(xW + b)."""
    B, F = x.shape
    x_t = x.T                                # [F, B]: batch on the lane axis
    b1 = b.reshape(1).astype(jnp.float32)
    tile_b = _pick_tile_b(B)
    grid = (B // tile_b,)

    out_row = pl.pallas_call(
        _logreg_kernel,
        out_shape=jax.ShapeDtypeStruct((1, B), jnp.float32),
        grid=grid,
        in_specs=[
            pl.BlockSpec((F, tile_b), lambda i: (0, i)),       # x^T tile (VMEM)
            pl.BlockSpec((F, 1), lambda i: (0, 0)),            # weights (VMEM)
            pl.BlockSpec(memory_space=pltpu.MemorySpace.SMEM),  # bias scalar
        ],
        out_specs=pl.BlockSpec((1, tile_b), lambda i: (0, i)),  # lane-dense out
        compiler_params=pltpu.CompilerParams(
            dimension_semantics=("parallel",),
        ),
    )(x_t, w, b1)

    return out_row.reshape(B, 1)             # back to the PyTorch [B, 1] shape


def _reference(x, w, b):
    return jax.nn.sigmoid(x @ w + b.reshape(1, 1))


if __name__ == "__main__":
    key = jax.random.PRNGKey(0)
    kx1, kx2, kw, kb = jax.random.split(key, 4)

    F = 6  # nn.Linear(6, 1)
    # Deterministic parameter init mimicking nn.Linear's uniform(-1/sqrt(F), 1/sqrt(F))
    bound = 1.0 / jnp.sqrt(jnp.float32(F))
    w = jax.random.uniform(kw, (F, 1), minval=-bound, maxval=bound, dtype=jnp.float32)
    b = jax.random.uniform(kb, (1,), minval=-bound, maxval=bound, dtype=jnp.float32)

    # Case 1: lane-dense batch (multiple of 128) -> tiled grid, [1, B] output.
    B1 = 256
    x1 = jax.random.normal(kx1, (B1, F), dtype=jnp.float32)
    y1 = logistic_regression(x1, w, b)
    jax.block_until_ready(y1)
    assert y1.shape == (B1, 1)
    assert jnp.allclose(y1, _reference(x1, w, b), atol=1e-5), "mismatch (B=256)"

    # Case 2: tiny batch (matches the original script's row-at-a-time usage).
    B2 = 8
    x2 = jax.random.normal(kx2, (B2, F), dtype=jnp.float32)
    y2 = logistic_regression(x2, w, b)
    jax.block_until_ready(y2)
    assert y2.shape == (B2, 1)
    assert jnp.allclose(y2, _reference(x2, w, b), atol=1e-5), "mismatch (B=8)"

    print("KERNEL_OK")
</pallas_src>

<mosaic_0001>
module attributes {stable_mosaic.version = 11 : i64} {
  func.func @_logreg_kernel(%arg0: i32, %arg1: memref<6x256xf32, #tpu.memory_space<vmem>>, %arg2: memref<6x1xf32, #tpu.memory_space<vmem>>, %arg3: memref<1xf32, #tpu.memory_space<smem>>, %arg4: memref<1x256xf32, #tpu.memory_space<vmem>>) attributes {dimension_semantics = [#tpu.dimension_semantics<parallel>], iteration_bounds = array<i64: 1>, scalar_prefetch = 0 : i64, scratch_operands = 0 : i64, tpu.core_type = #tpu.core_type<tc>, window_params = [{transform_indices = @transform_0, window_bounds = array<i64: 6, 256>}, {pipeline_mode = #tpu.pipeline_mode<synchronous>, transform_indices = @transform_1, window_bounds = array<i64: 6, 1>}, {transform_indices = @transform_2, window_bounds = array<i64: 1>}, {transform_indices = @transform_3, window_bounds = array<i64: 1, 256>}]} {
    %c0 = arith.constant 0 : index
    %c0_0 = arith.constant 0 : index
    %0 = vector.load %arg1[%c0, %c0_0] : memref<6x256xf32, #tpu.memory_space<vmem>>, vector<6x256xf32>
    %c0_1 = arith.constant 0 : index
    %c0_2 = arith.constant 0 : index
    %1 = vector.load %arg2[%c0_1, %c0_2] : memref<6x1xf32, #tpu.memory_space<vmem>>, vector<6x1xf32>
    %2 = vector.broadcast %1 : vector<6x1xf32> to vector<6x256xf32>
    %3 = arith.mulf %0, %2 : vector<6x256xf32>
    %cst = arith.constant dense<0.000000e+00> : vector<256xf32>
    %4 = vector.multi_reduction <add>, %3, %cst [0] : vector<6x256xf32> to vector<256xf32>
    %5 = vector.shape_cast %4 : vector<256xf32> to vector<1x256xf32>
    %c0_3 = arith.constant 0 : index
    %6 = memref.load %arg3[%c0_3] : memref<1xf32, #tpu.memory_space<smem>>
    %7 = vector.broadcast %6 : f32 to vector<1x256xf32>
    %8 = arith.addf %5, %7 : vector<1x256xf32>
    %9 = arith.negf %8 : vector<1x256xf32>
    %10 = math.exp %9 : vector<1x256xf32>
    %cst_4 = arith.constant 1.000000e+00 : f32
    %11 = vector.broadcast %cst_4 : f32 to vector<1x256xf32>
    %12 = arith.addf %11, %10 : vector<1x256xf32>
    %13 = arith.divf %11, %12 : vector<1x256xf32>
    %c0_5 = arith.constant 0 : index
    %c0_6 = arith.constant 0 : index
    %14 = vector.load %arg4[%c0_5, %c0_6] : memref<1x256xf32, #tpu.memory_space<vmem>>, vector<1x256xf32>
    tpu.vector_store %arg4[%c0_5, %c0_6], %13 {strides = array<i32>} : memref<1x256xf32, #tpu.memory_space<vmem>>, vector<1x256xf32>,
    return
  }
  func.func @transform_0(%arg0: i32) -> (i32, i32) {
    %c0_i32 = arith.constant 0 : i32
    %c0_i32_0 = arith.constant 0 : i32
    return %c0_i32, %arg0 : i32, i32
  }
  func.func @transform_1(%arg0: i32) -> (i32, i32) {
    %c0_i32 = arith.constant 0 : i32
    %c0_i32_0 = arith.constant 0 : i32
    %c0_i32_1 = arith.constant 0 : i32
    return %c0_i32, %c0_i32_0 : i32, i32
  }
  func.func @transform_2(%arg0: i32) -> i32 {
    %c0_i32 = arith.constant 0 : i32
    %c0_i32_0 = arith.constant 0 : i32
    return %c0_i32 : i32
  }
  func.func @transform_3(%arg0: i32) -> (i32, i32) {
    %c0_i32 = arith.constant 0 : i32
    %c0_i32_0 = arith.constant 0 : i32
    return %c0_i32, %arg0 : i32, i32
  }
}

</mosaic_0001>

<llo_original>
// kernel: tpu_custom_call.1
$region0: #{tpu_custom_call.1}
  #allocation0 [shape = 'u32[]', space=smem, size = 0x4, offset = 0x4, fixed_abs, tag = 'smem constant byte address 0x4 - core index']
  #allocation1 [shape = 'u32[144,128]{1,0:T(1,128)}', space=vmem, size = 0x12000, scoped, tag = 'internal scratch']
  #allocation2 [shape = 'f32[1]{0:T(128)S(6)}', space=smem, size = 0x200, scoped, tag = 'scoped memory for tpu_custom_call.1']
  %s0 = inlined_call_operand.hbm [shape: f32[6,256], index: 0, kind: input, shape index: {}]
  %s1 = inlined_call_operand.vmem [shape: f32[6,1], index: 1, kind: input, shape index: {}]
  %s2 = inlined_call_operand.<no memory space> [shape: f32[1], index: 2, kind: input, shape index: {}]
  %s3 = inlined_call_operand.hbm [shape: f32[1,256], index: 3, kind: output, shape index: {}]
  %s4 = sld [smem:[#allocation0]]
  $region26: #{tpu_custom_call.1} parent=0
    _
  %s6 = ssub.s32 1, %s4
  %s7 = scalar_select 0, %s6, %s4
  %8 = sst [smem:[#allocation2]] %s2
  $region1: #{tpu_custom_call.1} parent=0
    #allocation3 [shape = 'u8[8192]{0}', space=vmem, size = 0x2000, scoped, tag = 'input window, operand 0, single buffered']
    #allocation4 [shape = 's32[1]{0}', space=sflag, size = 0x4, scoped, tag = 'scoped memory for tpu_custom_call.1']
    #allocation5 [shape = 's32[1]{0}', space=sflag, size = 0x4, scoped, tag = 'scoped memory for tpu_custom_call.1']
    #allocation6 [shape = 'u8[1024]{0}', space=vmem, size = 0x400, scoped, tag = 'output window, operand 0, single buffered']
    %9 = vsyncpa [#allocation4], 0
    %10 = vsyncpa [#allocation5], 0
    // Predicated region
    $region2: #{tpu_custom_call.1} parent=1 // pred_check
      _
    $region3: #{tpu_custom_call.1} parent=1 // pred_check_branch
      %12 = sbr.rel (0) target = $region5
    $region4: #{tpu_custom_call.1} parent=1 // pred_region
      %s14 = ssub.s32 256, 256
      %15 = vsyncadd [#allocation4], %s14
      %s17 = sshll.u32 [#allocation3], 4
      %s18 = int_to_ptr.vmem [resolvable:$true] %s17
      %20 = dma.hbm_to_vmem [thread:$0]  %s0, 256, %s18, [#allocation4]
    $region5: #{tpu_custom_call.1} parent=1 // pred_fallthru
      _
    // Predicated region
    $region6: #{tpu_custom_call.1} parent=1 // pred_check
      _
    $region7: #{tpu_custom_call.1} parent=1 // pred_check_branch
      %22 = sbr.rel (0) target = $region9
    $region8: #{tpu_custom_call.1} parent=1 // pred_region
      _
    $region9: #{tpu_custom_call.1} parent=1 // pred_fallthru
      _
    // Predicated region
    $region10: #{tpu_custom_call.1} parent=1 // pred_check
      _
    $region11: #{tpu_custom_call.1} parent=1 // pred_check_branch
      %24 = sbr.rel (0) target = $region13
    $region12: #{tpu_custom_call.1} parent=1 // pred_region
      _
    $region13: #{tpu_custom_call.1} parent=1 // pred_fallthru
      _
    // Predicated region
    $region14: #{tpu_custom_call.1} parent=1 // pred_check
      _
    $region15: #{tpu_custom_call.1} parent=1 // pred_check_branch
      %26 = sbr.rel (0) target = $region17
    $region16: #{tpu_custom_call.1} parent=1 // pred_region
      %27 = dma.done [#allocation4], 256
    $region17: #{tpu_custom_call.1} parent=1 // pred_fallthru
      _
    %v28 = vld [vmem:[#allocation3] sm:$0x3f]
    %v29 = vld [vmem:[#allocation3 + $0x8] sm:$0x3f]
    %v30 = vld [vmem:[%s1] sm:$0x3f]
    %32 = vset.pattern.permute.xlu0 0
    %33 = vperm.xlu0 %32, %v30
    %v34 = vpop.permute.xlu0 %33
    %v36 = vmul.f32 %v28, %v34
    %v37 = vmul.f32 %v29, %v34
    %vm38 = vcmask 1045504
    %v39 = vsel %vm38, %v36, 0.0
    %v40 = vrot.slane %v39, 4
    %v41 = vadd.f32 %v39, %v40
    %v42 = vrot.slane %v41, 2
    %v43 = vadd.f32 %v41, %v42
    %v44 = vrot.slane %v43, 1
    %v45 = vadd.f32 %v43, %v44
    %v46 = vsel %vm38, %v37, 0.0
    %v47 = vrot.slane %v46, 4
    %v48 = vadd.f32 %v46, %v47
    %v49 = vrot.slane %v48, 2
    %v50 = vadd.f32 %v48, %v49
    %v51 = vrot.slane %v50, 1
    %v52 = vadd.f32 %v50, %v51
    %s53 = sld [smem:[#allocation2]]
    %v54 = vstv %s53
    %v55 = vadd.f32 %v45, %v54
    %v56 = vadd.f32 %v52, %v54
    %v57 = vxor.u32 %v55, 2147483648
    %v58 = vxor.u32 %v56, 2147483648
    %v59 = vmul.f32 %v57, 1.442695
    %v60 = vpow.pop %v59
    %v61 = vmul.f32 %v58, 1.442695
    %v62 = vpow.pop %v61
    %v63 = vadd.f32 %v60, 1.0
    %v64 = vadd.f32 %v62, 1.0
    %v65 = vrcp.pop %v63
    %v66 = vmul.f32 1.0, %v65
    %v67 = vrcp.pop %v64
    %v68 = vmul.f32 1.0, %v67
    %v71 = vcombine.low %v66, %v68
    %v73 = vunpack.c.l.s4 1966171168
    %v74 = vunpack.c.0.s8 %v73
    %v75 = vlaneseq
    %v76 = vshrl.u32 %v75, 7
    %v77 = vsub.s32 %v74, %v76
    %v78 = vrot.slane %v71, %v77
    %v80 = vunpack.c.l.s4 1966171168
    %v81 = vunpack.c.0.s8 %v80
    %v82 = vlaneseq
    %v83 = vshrl.u32 %v82, 7
    %v84 = vsub.s32 %v81, %v83
    %v85 = vrot.slane %v78, %v84
    %v87 = vlaneseq
    %vm88 = vcmp.ge.s32.totalorder %v87, 0
    %vm89 = vcmp.lt.s32.totalorder %v87, 256
    %vm90 = vmand %vm88, %vm89
    %91 = vst.msk [vmem:[#allocation6] sm:$0x3] %vm90, %v85
    // Predicated region
    $region18: #{tpu_custom_call.1} parent=1 // pred_check
      _
    $region19: #{tpu_custom_call.1} parent=1 // pred_check_branch
      %93 = sbr.rel (0) target = $region21
    $region20: #{tpu_custom_call.1} parent=1 // pred_region
      %s95 = ssub.s32 32, 32
      %96 = vsyncadd [#allocation5], %s95
      %s98 = sshll.u32 [#allocation6], 4
      %s99 = int_to_ptr.vmem [resolvable:$true] %s98
      %101 = dma.vmem_to_hbm [thread:$0]  %s99, 32, %s3, [#allocation5]
    $region21: #{tpu_custom_call.1} parent=1 // pred_fallthru
      _
    // Predicated region
    $region22: #{tpu_custom_call.1} parent=1 // pred_check
      _
    $region23: #{tpu_custom_call.1} parent=1 // pred_check_branch
      %103 = sbr.rel (0) target = $region25
    $region24: #{tpu_custom_call.1} parent=1 // pred_region
      %104 = dma.done [#allocation5], 32
    $region25: #{tpu_custom_call.1} parent=1 // pred_fallthru
      _
    %105 = vsyncpa [#allocation4], 1
    %106 = vsyncpa [#allocation5], 1

</llo_original>
